<compile_context>
chip_gen: v5e
topology: v5e:2x2
jax: 0.10.0
libtpu: 0.0.40
codegen_flags: <defaults>
</compile_context>

<pallas_src>
import jax
import jax.numpy as jnp
from jax.experimental import pallas as pl
from jax.experimental.pallas import tpu as pltpu

HIDDEN = 768       # DistilBERT hidden size / l4 output size
BOTTLENECK = 256   # l2 output size
TB = 512           # batch tile (multiple of 8); sized for v7x's 64 MiB VMEM


def mlp_head_kernel(x_ref, w2_ref, b2_ref, w4_ref, b4_ref, o_ref):
    """Fused l2 (Linear 768->256) + l3 (ReLU) + l4 (Linear 256->768).

    x_ref:  [TB, 768] f32      (activations, tiled over the batch grid axis)
    w2_ref: [768, 256] bf16    (VMEM-resident across the whole grid)
    b2_ref: [1, 256]  f32
    w4_ref: [256, 768] bf16    (VMEM-resident across the whole grid)
    b4_ref: [1, 768]  f32
    o_ref:  [TB, 768] f32
    """
    x = x_ref[...].astype(jnp.bfloat16)                                  # feed MXU in bf16
    h = jnp.dot(x, w2_ref[...], preferred_element_type=jnp.float32)      # [TB, 256] f32 acc
    h = jnp.maximum(h + b2_ref[...], 0.0)                                # bias + ReLU in f32
    y = jnp.dot(h.astype(jnp.bfloat16), w4_ref[...],
                preferred_element_type=jnp.float32)                      # [TB, 768] f32 acc
    o_ref[...] = (y + b4_ref[...]).astype(o_ref.dtype)


def prepare_head_params(w2, b2, w4, b4):
    """One-time parameter prep (NOT in the per-call path).

    PyTorch [out, in] weights -> kernel-friendly transposed [in, out] bf16 weights;
    biases reshaped to [1, N] f32.
    """
    return (
        jnp.asarray(w2.T, dtype=jnp.bfloat16),        # [768, 256]
        jnp.asarray(b2, jnp.float32).reshape(1, BOTTLENECK),
        jnp.asarray(w4.T, dtype=jnp.bfloat16),        # [256, 768]
        jnp.asarray(b4, jnp.float32).reshape(1, HIDDEN),
    )


def decoder_ood_head(x_cls, w2t_bf16, b2r, w4t_bf16, b4r):
    """x_cls: [B, 768] f32. Weights already prepped by prepare_head_params."""
    B = x_cls.shape[0]

    if B <= TB:
        # Single batch block (full-extent rule covers non-multiple-of-8 B, e.g. B=2).
        tb, b_pad = B, B
        x_in = x_cls
    else:
        # Pad batch up to a multiple of TB so every block is (TB, 768); slice back after.
        tb = TB
        b_pad = ((B + TB - 1) // TB) * TB
        x_in = jnp.pad(x_cls, ((0, b_pad - B), (0, 0)))
    grid = (b_pad // tb,)

    weight_bytes = (HIDDEN * BOTTLENECK + BOTTLENECK * HIDDEN) * 2   # bf16
    bias_bytes = (BOTTLENECK + HIDDEN) * 4
    act_bytes = 2 * b_pad * HIDDEN * 4                               # x + out, f32
    cost = pl.CostEstimate(
        flops=4 * b_pad * HIDDEN * BOTTLENECK,                       # two matmuls
        transcendentals=0,
        bytes_accessed=weight_bytes + bias_bytes + act_bytes,
    )

    out = pl.pallas_call(
        mlp_head_kernel,
        out_shape=jax.ShapeDtypeStruct((b_pad, HIDDEN), jnp.float32),
        grid=grid,
        in_specs=[
            pl.BlockSpec((tb, HIDDEN), lambda i: (i, 0)),                 # x: tiled over batch
            pl.BlockSpec((HIDDEN, BOTTLENECK), lambda i: (0, 0)),         # w2^T: resident
            pl.BlockSpec((1, BOTTLENECK), lambda i: (0, 0)),              # b2:   resident
            pl.BlockSpec((BOTTLENECK, HIDDEN), lambda i: (0, 0)),         # w4^T: resident
            pl.BlockSpec((1, HIDDEN), lambda i: (0, 0)),                  # b4:   resident
        ],
        out_specs=pl.BlockSpec((tb, HIDDEN), lambda i: (i, 0)),
        compiler_params=pltpu.CompilerParams(
            dimension_semantics=("parallel",),                            # 2x on v7x (2 TCs)
        ),
        cost_estimate=cost,
    )(x_in, w2t_bf16, b2r, w4t_bf16, b4r)

    return out if b_pad == B else out[:B]


def distilbert_cls_stub(ids, mask, emb_table):
    # TODO(synk): self.l1 is a *pretrained* DistilBERT encoder (6 transformer layers from a
    # HuggingFace checkpoint) — not reproducible in-script; stand in its last_hidden_state[:, 0]
    # with a deterministic embedding lookup of the position-0 (CLS) token.
    del mask
    return emb_table[ids[:, 0]]          # [B, 768]


if __name__ == "__main__":
    key = jax.random.PRNGKey(0)
    k_ids, k_emb, k_w2, k_b2, k_w4, k_b4 = jax.random.split(key, 6)

    B, S, VOCAB = 2, 8, 100
    ids = jax.random.randint(k_ids, (B, S), 0, VOCAB, dtype=jnp.int32)
    mask = jnp.ones((B, S), dtype=jnp.int32)
    emb_table = 0.02 * jax.random.normal(k_emb, (VOCAB, HIDDEN), dtype=jnp.float32)

    # Deterministic parameter init matching nn.Linear shapes (PyTorch [out, in] layout),
    # U(-1/sqrt(fan_in), 1/sqrt(fan_in)).
    lim2 = 1.0 / (HIDDEN ** 0.5)
    w2 = jax.random.uniform(k_w2, (BOTTLENECK, HIDDEN), jnp.float32, -lim2, lim2)
    b2 = jax.random.uniform(k_b2, (BOTTLENECK,), jnp.float32, -lim2, lim2)
    lim4 = 1.0 / (BOTTLENECK ** 0.5)
    w4 = jax.random.uniform(k_w4, (HIDDEN, BOTTLENECK), jnp.float32, -lim4, lim4)
    b4 = jax.random.uniform(k_b4, (HIDDEN,), jnp.float32, -lim4, lim4)

    # One-time weight prep (transpose + bf16 cast) — equivalent of loading the checkpoint
    # in kernel-friendly layout; not part of the per-call path.
    w2t_bf16, b2r, w4t_bf16, b4r = prepare_head_params(w2, b2, w4, b4)

    # forward(ids, mask)
    x_cls = distilbert_cls_stub(ids, mask, emb_table)               # [B, 768]
    out = decoder_ood_head(x_cls, w2t_bf16, b2r, w4t_bf16, b4r)     # [B, 768]
    out = jax.block_until_ready(out)
    assert out.shape == (B, HIDDEN)
    assert out.dtype == jnp.float32

    # Reference 1: mirrors the kernel's bf16 weight/activation casts with f32 accumulation.
    xb = x_cls.astype(jnp.bfloat16).astype(jnp.float32)
    w2f = w2t_bf16.astype(jnp.float32)
    w4f = w4t_bf16.astype(jnp.float32)
    h_ref = jnp.maximum(xb @ w2f + b2r, 0.0)
    ref_bf16 = h_ref.astype(jnp.bfloat16).astype(jnp.float32) @ w4f + b4r
    assert jnp.allclose(out, ref_bf16, atol=1e-3, rtol=1e-3)

    # Reference 2: original f32 PyTorch-layout math (looser tolerance due to bf16 weights).
    ref_f32 = jnp.maximum(x_cls @ w2.T + b2, 0.0) @ w4.T + b4
    assert jnp.allclose(out, ref_f32, atol=1e-2, rtol=1e-2)

    print("KERNEL_OK")
</pallas_src>

<mosaic_0001>
module attributes {stable_mosaic.version = 11 : i64} {
  func.func @mlp_head_kernel(%arg0: i32, %arg1: memref<2x768xf32, #tpu.memory_space<vmem>>, %arg2: memref<768x256xbf16, #tpu.memory_space<vmem>>, %arg3: memref<1x256xf32, #tpu.memory_space<vmem>>, %arg4: memref<256x768xbf16, #tpu.memory_space<vmem>>, %arg5: memref<1x768xf32, #tpu.memory_space<vmem>>, %arg6: memref<2x768xf32, #tpu.memory_space<vmem>>) attributes {dimension_semantics = [#tpu.dimension_semantics<parallel>], iteration_bounds = array<i64: 1>, scalar_prefetch = 0 : i64, scratch_operands = 0 : i64, tpu.core_type = #tpu.core_type<tc>, window_params = [{transform_indices = @transform_0, window_bounds = array<i64: 2, 768>}, {pipeline_mode = #tpu.pipeline_mode<synchronous>, transform_indices = @transform_1, window_bounds = array<i64: 768, 256>}, {pipeline_mode = #tpu.pipeline_mode<synchronous>, transform_indices = @transform_2, window_bounds = array<i64: 1, 256>}, {pipeline_mode = #tpu.pipeline_mode<synchronous>, transform_indices = @transform_3, window_bounds = array<i64: 256, 768>}, {pipeline_mode = #tpu.pipeline_mode<synchronous>, transform_indices = @transform_4, window_bounds = array<i64: 1, 768>}, {transform_indices = @transform_5, window_bounds = array<i64: 2, 768>}]} {
    %c0 = arith.constant 0 : index
    %c0_0 = arith.constant 0 : index
    %0 = vector.load %arg1[%c0, %c0_0] : memref<2x768xf32, #tpu.memory_space<vmem>>, vector<2x768xf32>
    %1 = arith.truncf %0 : vector<2x768xf32> to vector<2x768xbf16>
    %c0_1 = arith.constant 0 : index
    %c0_2 = arith.constant 0 : index
    %2 = vector.load %arg2[%c0_1, %c0_2] : memref<768x256xbf16, #tpu.memory_space<vmem>>, vector<768x256xbf16>
    %cst = arith.constant dense<0.000000e+00> : vector<2x256xf32>
    %3 = tpu.matmul %1, %2, %cst {dimension_numbers = #tpu.dot_dimension_numbers<[1], [0], [0], [1], [0, 0, 1, 1], [], []>} : vector<2x768xbf16>, vector<768x256xbf16>, vector<2x256xf32> -> vector<2x256xf32>
    %c0_3 = arith.constant 0 : index
    %c0_4 = arith.constant 0 : index
    %4 = vector.load %arg3[%c0_3, %c0_4] : memref<1x256xf32, #tpu.memory_space<vmem>>, vector<1x256xf32>
    %5 = vector.broadcast %4 : vector<1x256xf32> to vector<2x256xf32>
    %6 = arith.addf %3, %5 : vector<2x256xf32>
    %cst_5 = arith.constant 0.000000e+00 : f32
    %7 = vector.broadcast %cst_5 : f32 to vector<2x256xf32>
    %8 = arith.maximumf %6, %7 : vector<2x256xf32>
    %9 = arith.truncf %8 : vector<2x256xf32> to vector<2x256xbf16>
    %c0_6 = arith.constant 0 : index
    %c0_7 = arith.constant 0 : index
    %10 = vector.load %arg4[%c0_6, %c0_7] : memref<256x768xbf16, #tpu.memory_space<vmem>>, vector<256x768xbf16>
    %cst_8 = arith.constant dense<0.000000e+00> : vector<2x768xf32>
    %11 = tpu.matmul %9, %10, %cst_8 {dimension_numbers = #tpu.dot_dimension_numbers<[1], [0], [0], [1], [0, 0, 1, 1], [], []>} : vector<2x256xbf16>, vector<256x768xbf16>, vector<2x768xf32> -> vector<2x768xf32>
    %c0_9 = arith.constant 0 : index
    %c0_10 = arith.constant 0 : index
    %12 = vector.load %arg5[%c0_9, %c0_10] : memref<1x768xf32, #tpu.memory_space<vmem>>, vector<1x768xf32>
    %13 = vector.broadcast %12 : vector<1x768xf32> to vector<2x768xf32>
    %14 = arith.addf %11, %13 : vector<2x768xf32>
    %c0_11 = arith.constant 0 : index
    %c0_12 = arith.constant 0 : index
    %15 = vector.load %arg6[%c0_11, %c0_12] : memref<2x768xf32, #tpu.memory_space<vmem>>, vector<2x768xf32>
    tpu.vector_store %arg6[%c0_11, %c0_12], %14 {strides = array<i32>} : memref<2x768xf32, #tpu.memory_space<vmem>>, vector<2x768xf32>,
    return
  }
  func.func @transform_0(%arg0: i32) -> (i32, i32) {
    %c0_i32 = arith.constant 0 : i32
    %c0_i32_0 = arith.constant 0 : i32
    return %arg0, %c0_i32 : i32, i32
  }
  func.func @transform_1(%arg0: i32) -> (i32, i32) {
    %c0_i32 = arith.constant 0 : i32
    %c0_i32_0 = arith.constant 0 : i32
    %c0_i32_1 = arith.constant 0 : i32
    return %c0_i32, %c0_i32_0 : i32, i32
  }
  func.func @transform_2(%arg0: i32) -> (i32, i32) {
    %c0_i32 = arith.constant 0 : i32
    %c0_i32_0 = arith.constant 0 : i32
    %c0_i32_1 = arith.constant 0 : i32
    return %c0_i32, %c0_i32_0 : i32, i32
  }
  func.func @transform_3(%arg0: i32) -> (i32, i32) {
    %c0_i32 = arith.constant 0 : i32
    %c0_i32_0 = arith.constant 0 : i32
    %c0_i32_1 = arith.constant 0 : i32
    return %c0_i32, %c0_i32_0 : i32, i32
  }
  func.func @transform_4(%arg0: i32) -> (i32, i32) {
    %c0_i32 = arith.constant 0 : i32
    %c0_i32_0 = arith.constant 0 : i32
    %c0_i32_1 = arith.constant 0 : i32
    return %c0_i32, %c0_i32_0 : i32, i32
  }
  func.func @transform_5(%arg0: i32) -> (i32, i32) {
    %c0_i32 = arith.constant 0 : i32
    %c0_i32_0 = arith.constant 0 : i32
    return %arg0, %c0_i32 : i32, i32
  }
}

</mosaic_0001>

<llo_original>
// kernel: tpu_custom_call.1
$region0: #{tpu_custom_call.1}
  #allocation0 [shape = 'u32[]', space=smem, size = 0x4, offset = 0x4, fixed_abs, tag = 'smem constant byte address 0x4 - core index']
  #allocation1 [shape = 'u32[72,128]{1,0:T(1,128)}', space=vmem, size = 0x9000, scoped, tag = 'internal scratch']
  %s0 = inlined_call_operand.hbm [shape: f32[2,768], index: 0, kind: input, shape index: {}]
  %s1 = inlined_call_operand.hbm [shape: bf16[768,256], index: 1, kind: input, shape index: {}]
  %s2 = inlined_call_operand.hbm [shape: f32[1,256], index: 2, kind: input, shape index: {}]
  %s3 = inlined_call_operand.hbm [shape: bf16[256,768], index: 3, kind: input, shape index: {}]
  %s4 = inlined_call_operand.hbm [shape: f32[1,768], index: 4, kind: input, shape index: {}]
  %s5 = inlined_call_operand.hbm [shape: f32[2,768], index: 5, kind: output, shape index: {}]
  %s6 = sld [smem:[#allocation0]]
  $region50: #{tpu_custom_call.1} parent=0
    _
  %s8 = ssub.s32 1, %s6
  %s9 = scalar_select 0, %s8, %s6
  $region1: #{tpu_custom_call.1} parent=0
    #allocation2 [shape = 'u8[6144]{0}', space=vmem, size = 0x1800, scoped, tag = 'input window, operand 0, single buffered']
    #allocation3 [shape = 's32[1]{0}', space=sflag, size = 0x4, scoped, tag = 'scoped memory for tpu_custom_call.1']
    #allocation4 [shape = 's32[1]{0}', space=sflag, size = 0x4, scoped, tag = 'scoped memory for tpu_custom_call.1']
    #allocation5 [shape = 'u8[393216]{0}', space=vmem, size = 0x60000, scoped, tag = 'input window, operand 1, single buffered']
    #allocation6 [shape = 's32[1]{0}', space=sflag, size = 0x4, scoped, tag = 'scoped memory for tpu_custom_call.1']
    #allocation7 [shape = 'u8[1024]{0}', space=vmem, size = 0x400, scoped, tag = 'input window, operand 2, single buffered']
    #allocation8 [shape = 'u8[393216]{0}', space=vmem, size = 0x60000, scoped, tag = 'input window, operand 3, single buffered']
    #allocation9 [shape = 's32[1]{0}', space=sflag, size = 0x4, scoped, tag = 'scoped memory for tpu_custom_call.1']
    #allocation10 [shape = 'u8[3072]{0}', space=vmem, size = 0xc00, scoped, tag = 'input window, operand 4, single buffered']
    #allocation11 [shape = 'u8[6144]{0}', space=vmem, size = 0x1800, scoped, tag = 'output window, operand 0, single buffered']
    %10 = vsyncpa [#allocation3], 0
    %11 = vsyncpa [#allocation6], 0
    %12 = vsyncpa [#allocation9], 0
    %13 = vsyncpa [#allocation4], 0
    // Predicated region
    $region2: #{tpu_custom_call.1} parent=1 // pred_check
      _
    $region3: #{tpu_custom_call.1} parent=1 // pred_check_branch
      %15 = sbr.rel (0) target = $region5
    $region4: #{tpu_custom_call.1} parent=1 // pred_region
      %17 = vsyncadd [#allocation3], 0
      %s19 = sshll.u32 %s0, 4
      %s20 = int_to_ptr.hbm [resolvable:$true] %s19
      %s21 = sshll.u32 [#allocation2], 4
      %s22 = int_to_ptr.vmem [resolvable:$true] %s21
      %24 = dma.hbm_to_vmem [thread:$0]  %s20, 192, %s22, [#allocation3]
    $region5: #{tpu_custom_call.1} parent=1 // pred_fallthru
      _
    // Predicated region
    $region6: #{tpu_custom_call.1} parent=1 // pred_check
      _
    $region7: #{tpu_custom_call.1} parent=1 // pred_check_branch
      %26 = sbr.rel (0) target = $region9
    $region8: #{tpu_custom_call.1} parent=1 // pred_region
      %28 = vsyncadd [#allocation6], 0
      %s29 = sshll.u32 %s1, 4
      %s30 = int_to_ptr.hbm [resolvable:$true] %s29
      %s31 = sshll.u32 [#allocation5], 4
      %s32 = int_to_ptr.vmem [resolvable:$true] %s31
      %37 = dma.hbm_to_vmem [thread:$0]  %s30, 12288, %s32, [#allocation6], 128, 128, 8
    $region9: #{tpu_custom_call.1} parent=1 // pred_fallthru
      _
    // Predicated region
    $region10: #{tpu_custom_call.1} parent=1 // pred_check
      _
    $region11: #{tpu_custom_call.1} parent=1 // pred_check_branch
      %39 = sbr.rel (0) target = $region13
    $region12: #{tpu_custom_call.1} parent=1 // pred_region
      %41 = vsyncadd [#allocation6], 0
      %s43 = sshll.u32 %s2, 4
      %s44 = int_to_ptr.hbm [resolvable:$true] %s43
      %s45 = sshll.u32 [#allocation7], 4
      %s46 = int_to_ptr.vmem [resolvable:$true] %s45
      %48 = dma.hbm_to_vmem [thread:$0]  %s44, 32, %s46, [#allocation6]
    $region13: #{tpu_custom_call.1} parent=1 // pred_fallthru
      _
    // Predicated region
    $region14: #{tpu_custom_call.1} parent=1 // pred_check
      _
    $region15: #{tpu_custom_call.1} parent=1 // pred_check_branch
      %50 = sbr.rel (0) target = $region17
    $region16: #{tpu_custom_call.1} parent=1 // pred_region
      %52 = vsyncadd [#allocation9], 0
      %s53 = sshll.u32 %s3, 4
      %s54 = int_to_ptr.hbm [resolvable:$true] %s53
      %s55 = sshll.u32 [#allocation8], 4
      %s56 = int_to_ptr.vmem [resolvable:$true] %s55
      %61 = dma.hbm_to_vmem [thread:$0]  %s54, 12288, %s56, [#allocation9], 384, 384, 24
    $region17: #{tpu_custom_call.1} parent=1 // pred_fallthru
      _
    // Predicated region
    $region18: #{tpu_custom_call.1} parent=1 // pred_check
      _
    $region19: #{tpu_custom_call.1} parent=1 // pred_check_branch
      %63 = sbr.rel (0) target = $region21
    $region20: #{tpu_custom_call.1} parent=1 // pred_region
      %65 = vsyncadd [#allocation9], 0
      %s67 = sshll.u32 %s4, 4
      %s68 = int_to_ptr.hbm [resolvable:$true] %s67
      %s69 = sshll.u32 [#allocation10], 4
      %s70 = int_to_ptr.vmem [resolvable:$true] %s69
      %72 = dma.hbm_to_vmem [thread:$0]  %s68, 96, %s70, [#allocation9]
    $region21: #{tpu_custom_call.1} parent=1 // pred_fallthru
      _
    // Predicated region
    $region22: #{tpu_custom_call.1} parent=1 // pred_check
      _
    $region23: #{tpu_custom_call.1} parent=1 // pred_check_branch
      %74 = sbr.rel (0) target = $region25
    $region24: #{tpu_custom_call.1} parent=1 // pred_region
      %76 = dma.done [#allocation3], 192
    $region25: #{tpu_custom_call.1} parent=1 // pred_fallthru
      _
    // Predicated region
    $region26: #{tpu_custom_call.1} parent=1 // pred_check
      _
    $region27: #{tpu_custom_call.1} parent=1 // pred_check_branch
      %78 = sbr.rel (0) target = $region29
    $region28: #{tpu_custom_call.1} parent=1 // pred_region
      %80 = dma.done [#allocation6], 12288
    $region29: #{tpu_custom_call.1} parent=1 // pred_fallthru
      _
    // Predicated region
    $region30: #{tpu_custom_call.1} parent=1 // pred_check
      _
    $region31: #{tpu_custom_call.1} parent=1 // pred_check_branch
      %82 = sbr.rel (0) target = $region33
    $region32: #{tpu_custom_call.1} parent=1 // pred_region
      %84 = dma.done [#allocation6], 32
    $region33: #{tpu_custom_call.1} parent=1 // pred_fallthru
      _
    // Predicated region
    $region34: #{tpu_custom_call.1} parent=1 // pred_check
      _
    $region35: #{tpu_custom_call.1} parent=1 // pred_check_branch
      %86 = sbr.rel (0) target = $region37
    $region36: #{tpu_custom_call.1} parent=1 // pred_region
      %88 = dma.done [#allocation9], 12288
    $region37: #{tpu_custom_call.1} parent=1 // pred_fallthru
      _
    // Predicated region
    $region38: #{tpu_custom_call.1} parent=1 // pred_check
      _
    $region39: #{tpu_custom_call.1} parent=1 // pred_check_branch
      %90 = sbr.rel (0) target = $region41
    $region40: #{tpu_custom_call.1} parent=1 // pred_region
      %92 = dma.done [#allocation9], 96
    $region41: #{tpu_custom_call.1} parent=1 // pred_fallthru
      _
    %v93 = vld [vmem:[#allocation2] sm:$0xff]
    %v94 = vld [vmem:[#allocation2 + $0x8] sm:$0xf]
    %97 = vst [vmem:[#allocation1] ss:$4 sm:$0xff] %v93
    %s98 = scalar_lea.vmem [#allocation1], 32
    %99 = vst [vmem:[%s98] ss:$4 sm:$0xff] %v94
    %v100 = vld.sshfl [vmem:[#allocation1] sm:$0xff pattern:$0x73625140]
    %v101 = vld.sshfl [vmem:[#allocation1 + $0x8] sm:$0xff pattern:$0x73625140]
    %v102 = vld.sshfl [vmem:[#allocation1 + $0x10] sm:$0xff pattern:$0x73625140]
    %v103 = vld.sshfl [vmem:[#allocation1 + $0x18] sm:$0xff pattern:$0x73625140]
    %v104 = vld.sshfl [vmem:[#allocation1 + $0x20] sm:$0xff pattern:$0x73625140]
    %v105 = vld.sshfl [vmem:[#allocation1 + $0x28] sm:$0xff pattern:$0x73625140]
    %v112 = vpack.c.bf16 %v100, %v100
    %v113 = vpack.c.bf16 %v101, %v101
    %v114 = vpack.c.bf16 %v102, %v102
    %v115 = vpack.c.bf16 %v103, %v103
    %v116 = vpack.c.bf16 %v104, %v104
    %v117 = vpack.c.bf16 %v105, %v105
    %v118 = vld [vmem:[#allocation5] sm:$0xff]
    %v119 = vld [vmem:[#allocation5 + $0x8] sm:$0xff]
    %v120 = vld [vmem:[#allocation5 + $0x10] sm:$0xff]
    %v121 = vld [vmem:[#allocation5 + $0x18] sm:$0xff]
    %v122 = vld [vmem:[#allocation5 + $0x20] sm:$0xff]
    %v123 = vld [vmem:[#allocation5 + $0x28] sm:$0xff]
    %v124 = vld [vmem:[#allocation5 + $0x30] sm:$0xff]
    %v125 = vld [vmem:[#allocation5 + $0x38] sm:$0xff]
    %v126 = vld [vmem:[#allocation5 + $0x40] sm:$0xff]
    %v127 = vld [vmem:[#allocation5 + $0x48] sm:$0xff]
    %v128 = vld [vmem:[#allocation5 + $0x50] sm:$0xff]
    %v129 = vld [vmem:[#allocation5 + $0x58] sm:$0xff]
    %v130 = vld [vmem:[#allocation5 + $0x60] sm:$0xff]
    %v131 = vld [vmem:[#allocation5 + $0x68] sm:$0xff]
    %v132 = vld [vmem:[#allocation5 + $0x70] sm:$0xff]
    %v133 = vld [vmem:[#allocation5 + $0x78] sm:$0xff]
    %v134 = vld [vmem:[#allocation5 + $0x80] sm:$0xff]
    %v135 = vld [vmem:[#allocation5 + $0x88] sm:$0xff]
    %v136 = vld [vmem:[#allocation5 + $0x90] sm:$0xff]
    %v137 = vld [vmem:[#allocation5 + $0x98] sm:$0xff]
    %v138 = vld [vmem:[#allocation5 + $0xa0] sm:$0xff]
    %v139 = vld [vmem:[#allocation5 + $0xa8] sm:$0xff]
    %v140 = vld [vmem:[#allocation5 + $0xb0] sm:$0xff]
    %v141 = vld [vmem:[#allocation5 + $0xb8] sm:$0xff]
    %v142 = vld [vmem:[#allocation5 + $0xc0] sm:$0xff]
    %v143 = vld [vmem:[#allocation5 + $0xc8] sm:$0xff]
    %v144 = vld [vmem:[#allocation5 + $0xd0] sm:$0xff]
    %v145 = vld [vmem:[#allocation5 + $0xd8] sm:$0xff]
    %v146 = vld [vmem:[#allocation5 + $0xe0] sm:$0xff]
    %v147 = vld [vmem:[#allocation5 + $0xe8] sm:$0xff]
    %v148 = vld [vmem:[#allocation5 + $0xf0] sm:$0xff]
    %v149 = vld [vmem:[#allocation5 + $0xf8] sm:$0xff]
    %v150 = vld [vmem:[#allocation5 + $0x100] sm:$0xff]
    %v151 = vld [vmem:[#allocation5 + $0x108] sm:$0xff]
    %v152 = vld [vmem:[#allocation5 + $0x110] sm:$0xff]
    %v153 = vld [vmem:[#allocation5 + $0x118] sm:$0xff]
    %v154 = vld [vmem:[#allocation5 + $0x120] sm:$0xff]
    %v155 = vld [vmem:[#allocation5 + $0x128] sm:$0xff]
    %v156 = vld [vmem:[#allocation5 + $0x130] sm:$0xff]
    %v157 = vld [vmem:[#allocation5 + $0x138] sm:$0xff]
    %v158 = vld [vmem:[#allocation5 + $0x140] sm:$0xff]
    %v159 = vld [vmem:[#allocation5 + $0x148] sm:$0xff]
    %v160 = vld [vmem:[#allocation5 + $0x150] sm:$0xff]
    %v161 = vld [vmem:[#allocation5 + $0x158] sm:$0xff]
    %v162 = vld [vmem:[#allocation5 + $0x160] sm:$0xff]
    %v163 = vld [vmem:[#allocation5 + $0x168] sm:$0xff]
    %v164 = vld [vmem:[#allocation5 + $0x170] sm:$0xff]
    %v165 = vld [vmem:[#allocation5 + $0x178] sm:$0xff]
    %v166 = vld [vmem:[#allocation5 + $0x180] sm:$0xff]
    %v167 = vld [vmem:[#allocation5 + $0x188] sm:$0xff]
    %v168 = vld [vmem:[#allocation5 + $0x190] sm:$0xff]
    %v169 = vld [vmem:[#allocation5 + $0x198] sm:$0xff]
    %v170 = vld [vmem:[#allocation5 + $0x1a0] sm:$0xff]
    %v171 = vld [vmem:[#allocation5 + $0x1a8] sm:$0xff]
    %v172 = vld [vmem:[#allocation5 + $0x1b0] sm:$0xff]
    %v173 = vld [vmem:[#allocation5 + $0x1b8] sm:$0xff]
    %v174 = vld [vmem:[#allocation5 + $0x1c0] sm:$0xff]
    %v175 = vld [vmem:[#allocation5 + $0x1c8] sm:$0xff]
    %v176 = vld [vmem:[#allocation5 + $0x1d0] sm:$0xff]
    %v177 = vld [vmem:[#allocation5 + $0x1d8] sm:$0xff]
    %v178 = vld [vmem:[#allocation5 + $0x1e0] sm:$0xff]
    %v179 = vld [vmem:[#allocation5 + $0x1e8] sm:$0xff]
    %v180 = vld [vmem:[#allocation5 + $0x1f0] sm:$0xff]
    %v181 = vld [vmem:[#allocation5 + $0x1f8] sm:$0xff]
    %v182 = vld [vmem:[#allocation5 + $0x200] sm:$0xff]
    %v183 = vld [vmem:[#allocation5 + $0x208] sm:$0xff]
    %v184 = vld [vmem:[#allocation5 + $0x210] sm:$0xff]
    %v185 = vld [vmem:[#allocation5 + $0x218] sm:$0xff]
    %v186 = vld [vmem:[#allocation5 + $0x220] sm:$0xff]
    %v187 = vld [vmem:[#allocation5 + $0x228] sm:$0xff]
    %v188 = vld [vmem:[#allocation5 + $0x230] sm:$0xff]
    %v189 = vld [vmem:[#allocation5 + $0x238] sm:$0xff]
    %v190 = vld [vmem:[#allocation5 + $0x240] sm:$0xff]
    %v191 = vld [vmem:[#allocation5 + $0x248] sm:$0xff]
    %v192 = vld [vmem:[#allocation5 + $0x250] sm:$0xff]
    %v193 = vld [vmem:[#allocation5 + $0x258] sm:$0xff]
    %v194 = vld [vmem:[#allocation5 + $0x260] sm:$0xff]
    %v195 = vld [vmem:[#allocation5 + $0x268] sm:$0xff]
    %v196 = vld [vmem:[#allocation5 + $0x270] sm:$0xff]
    %v197 = vld [vmem:[#allocation5 + $0x278] sm:$0xff]
    %v198 = vld [vmem:[#allocation5 + $0x280] sm:$0xff]
    %v199 = vld [vmem:[#allocation5 + $0x288] sm:$0xff]
    %v200 = vld [vmem:[#allocation5 + $0x290] sm:$0xff]
    %v201 = vld [vmem:[#allocation5 + $0x298] sm:$0xff]
    %v202 = vld [vmem:[#allocation5 + $0x2a0] sm:$0xff]
    %v203 = vld [vmem:[#allocation5 + $0x2a8] sm:$0xff]
    %v204 = vld [vmem:[#allocation5 + $0x2b0] sm:$0xff]
    %v205 = vld [vmem:[#allocation5 + $0x2b8] sm:$0xff]
    %v206 = vld [vmem:[#allocation5 + $0x2c0] sm:$0xff]
    %v207 = vld [vmem:[#allocation5 + $0x2c8] sm:$0xff]
    %v208 = vld [vmem:[#allocation5 + $0x2d0] sm:$0xff]
    %v209 = vld [vmem:[#allocation5 + $0x2d8] sm:$0xff]
    %v210 = vld [vmem:[#allocation5 + $0x2e0] sm:$0xff]
    %v211 = vld [vmem:[#allocation5 + $0x2e8] sm:$0xff]
    %v212 = vld [vmem:[#allocation5 + $0x2f0] sm:$0xff]
    %v213 = vld [vmem:[#allocation5 + $0x2f8] sm:$0xff]
    %v214 = vld [vmem:[#allocation7] sm:$0x3]
    %v216 = vperm.slane %v214, 0
    %v217 = vperm.slane %v214, 1
    %v316 = vunpack.c.l.b16 %v118
    %v317 = vunpack.c.h.b16 %v118
    %v318 = vunpack.c.l.b16 %v119
    %v319 = vunpack.c.h.b16 %v119
    %v320 = vunpack.c.l.b16 %v120
    %v321 = vunpack.c.h.b16 %v120
    %v322 = vunpack.c.l.b16 %v121
    %v323 = vunpack.c.h.b16 %v121
    %v324 = vunpack.c.l.b16 %v122
    %v325 = vunpack.c.h.b16 %v122
    %v326 = vunpack.c.l.b16 %v123
    %v327 = vunpack.c.h.b16 %v123
    %v328 = vunpack.c.l.b16 %v124
    %v329 = vunpack.c.h.b16 %v124
    %v330 = vunpack.c.l.b16 %v125
    %v331 = vunpack.c.h.b16 %v125
    %v332 = vunpack.c.l.b16 %v126
    %v333 = vunpack.c.h.b16 %v126
    %v334 = vunpack.c.l.b16 %v127
    %v335 = vunpack.c.h.b16 %v127
    %v336 = vunpack.c.l.b16 %v128
    %v337 = vunpack.c.h.b16 %v128
    %v338 = vunpack.c.l.b16 %v129
    %v339 = vunpack.c.h.b16 %v129
    %v340 = vunpack.c.l.b16 %v130
    %v341 = vunpack.c.h.b16 %v130
    %v342 = vunpack.c.l.b16 %v131
    %v343 = vunpack.c.h.b16 %v131
    %v344 = vunpack.c.l.b16 %v132
    %v345 = vunpack.c.h.b16 %v132
    %v346 = vunpack.c.l.b16 %v133
    %v347 = vunpack.c.h.b16 %v133
    %v348 = vunpack.c.l.b16 %v134
    %v349 = vunpack.c.h.b16 %v134
    %v350 = vunpack.c.l.b16 %v135
    %v351 = vunpack.c.h.b16 %v135
    %v352 = vunpack.c.l.b16 %v136
    %v353 = vunpack.c.h.b16 %v136
    %v354 = vunpack.c.l.b16 %v137
    %v355 = vunpack.c.h.b16 %v137
    %v356 = vunpack.c.l.b16 %v138
    %v357 = vunpack.c.h.b16 %v138
    %v358 = vunpack.c.l.b16 %v139
    %v359 = vunpack.c.h.b16 %v139
    %v360 = vunpack.c.l.b16 %v140
    %v361 = vunpack.c.h.b16 %v140
    %v362 = vunpack.c.l.b16 %v141
    %v363 = vunpack.c.h.b16 %v141
    %v364 = vunpack.c.l.b16 %v142
    %v365 = vunpack.c.h.b16 %v142
    %v366 = vunpack.c.l.b16 %v143
    %v367 = vunpack.c.h.b16 %v143
    %v368 = vunpack.c.l.b16 %v144
    %v369 = vunpack.c.h.b16 %v144
    %v370 = vunpack.c.l.b16 %v145
    %v371 = vunpack.c.h.b16 %v145
    %v372 = vunpack.c.l.b16 %v146
    %v373 = vunpack.c.h.b16 %v146
    %v374 = vunpack.c.l.b16 %v147
    %v375 = vunpack.c.h.b16 %v147
    %v376 = vunpack.c.l.b16 %v148
    %v377 = vunpack.c.h.b16 %v148
    %v378 = vunpack.c.l.b16 %v149
    %v379 = vunpack.c.h.b16 %v149
    %v380 = vunpack.c.l.b16 %v150
    %v381 = vunpack.c.h.b16 %v150
    %v382 = vunpack.c.l.b16 %v151
    %v383 = vunpack.c.h.b16 %v151
    %v384 = vunpack.c.l.b16 %v152
    %v385 = vunpack.c.h.b16 %v152
    %v386 = vunpack.c.l.b16 %v153
    %v387 = vunpack.c.h.b16 %v153
    %v388 = vunpack.c.l.b16 %v154
    %v389 = vunpack.c.h.b16 %v154
    %v390 = vunpack.c.l.b16 %v155
    %v391 = vunpack.c.h.b16 %v155
    %v392 = vunpack.c.l.b16 %v156
    %v393 = vunpack.c.h.b16 %v156
    %v394 = vunpack.c.l.b16 %v157
    %v395 = vunpack.c.h.b16 %v157
    %v396 = vunpack.c.l.b16 %v158
    %v397 = vunpack.c.h.b16 %v158
    %v398 = vunpack.c.l.b16 %v159
    %v399 = vunpack.c.h.b16 %v159
    %v400 = vunpack.c.l.b16 %v160
    %v401 = vunpack.c.h.b16 %v160
    %v402 = vunpack.c.l.b16 %v161
    %v403 = vunpack.c.h.b16 %v161
    %v404 = vunpack.c.l.b16 %v162
    %v405 = vunpack.c.h.b16 %v162
    %v406 = vunpack.c.l.b16 %v163
    %v407 = vunpack.c.h.b16 %v163
    %v408 = vunpack.c.l.b16 %v164
    %v409 = vunpack.c.h.b16 %v164
    %v410 = vunpack.c.l.b16 %v165
    %v411 = vunpack.c.h.b16 %v165
    %v412 = vunpack.c.l.b16 %v166
    %v413 = vunpack.c.h.b16 %v166
    %v414 = vunpack.c.l.b16 %v167
    %v415 = vunpack.c.h.b16 %v167
    %v416 = vunpack.c.l.b16 %v168
    %v417 = vunpack.c.h.b16 %v168
    %v418 = vunpack.c.l.b16 %v169
    %v419 = vunpack.c.h.b16 %v169
    %v420 = vunpack.c.l.b16 %v170
    %v421 = vunpack.c.h.b16 %v170
    %v422 = vunpack.c.l.b16 %v171
    %v423 = vunpack.c.h.b16 %v171
    %v424 = vunpack.c.l.b16 %v172
    %v425 = vunpack.c.h.b16 %v172
    %v426 = vunpack.c.l.b16 %v173
    %v427 = vunpack.c.h.b16 %v173
    %v428 = vunpack.c.l.b16 %v174
    %v429 = vunpack.c.h.b16 %v174
    %v430 = vunpack.c.l.b16 %v175
    %v431 = vunpack.c.h.b16 %v175
    %v432 = vunpack.c.l.b16 %v176
    %v433 = vunpack.c.h.b16 %v176
    %v434 = vunpack.c.l.b16 %v177
    %v435 = vunpack.c.h.b16 %v177
    %v436 = vunpack.c.l.b16 %v178
    %v437 = vunpack.c.h.b16 %v178
    %v438 = vunpack.c.l.b16 %v179
    %v439 = vunpack.c.h.b16 %v179
    %v440 = vunpack.c.l.b16 %v180
    %v441 = vunpack.c.h.b16 %v180
    %v442 = vunpack.c.l.b16 %v181
    %v443 = vunpack.c.h.b16 %v181
    %v444 = vunpack.c.l.b16 %v182
    %v445 = vunpack.c.h.b16 %v182
    %v446 = vunpack.c.l.b16 %v183
    %v447 = vunpack.c.h.b16 %v183
    %v448 = vunpack.c.l.b16 %v184
    %v449 = vunpack.c.h.b16 %v184
    %v450 = vunpack.c.l.b16 %v185
    %v451 = vunpack.c.h.b16 %v185
    %v452 = vunpack.c.l.b16 %v186
    %v453 = vunpack.c.h.b16 %v186
    %v454 = vunpack.c.l.b16 %v187
    %v455 = vunpack.c.h.b16 %v187
    %v456 = vunpack.c.l.b16 %v188
    %v457 = vunpack.c.h.b16 %v188
    %v458 = vunpack.c.l.b16 %v189
    %v459 = vunpack.c.h.b16 %v189
    %v460 = vunpack.c.l.b16 %v190
    %v461 = vunpack.c.h.b16 %v190
    %v462 = vunpack.c.l.b16 %v191
    %v463 = vunpack.c.h.b16 %v191
    %v464 = vunpack.c.l.b16 %v192
    %v465 = vunpack.c.h.b16 %v192
    %v466 = vunpack.c.l.b16 %v193
    %v467 = vunpack.c.h.b16 %v193
    %v468 = vunpack.c.l.b16 %v194
    %v469 = vunpack.c.h.b16 %v194
    %v470 = vunpack.c.l.b16 %v195
    %v471 = vunpack.c.h.b16 %v195
    %v472 = vunpack.c.l.b16 %v196
    %v473 = vunpack.c.h.b16 %v196
    %v474 = vunpack.c.l.b16 %v197
    %v475 = vunpack.c.h.b16 %v197
    %v476 = vunpack.c.l.b16 %v198
    %v477 = vunpack.c.h.b16 %v198
    %v478 = vunpack.c.l.b16 %v199
    %v479 = vunpack.c.h.b16 %v199
    %v480 = vunpack.c.l.b16 %v200
    %v481 = vunpack.c.h.b16 %v200
    %v482 = vunpack.c.l.b16 %v201
    %v483 = vunpack.c.h.b16 %v201
    %v484 = vunpack.c.l.b16 %v202
    %v485 = vunpack.c.h.b16 %v202
    %v486 = vunpack.c.l.b16 %v203
    %v487 = vunpack.c.h.b16 %v203
    %v488 = vunpack.c.l.b16 %v204
    %v489 = vunpack.c.h.b16 %v204
    %v490 = vunpack.c.l.b16 %v205
    %v491 = vunpack.c.h.b16 %v205
    %v492 = vunpack.c.l.b16 %v206
    %v493 = vunpack.c.h.b16 %v206
    %v494 = vunpack.c.l.b16 %v207
    %v495 = vunpack.c.h.b16 %v207
    %v496 = vunpack.c.l.b16 %v208
    %v497 = vunpack.c.h.b16 %v208
    %v498 = vunpack.c.l.b16 %v209
    %v499 = vunpack.c.h.b16 %v209
    %v500 = vunpack.c.l.b16 %v210
    %v501 = vunpack.c.h.b16 %v210
    %v502 = vunpack.c.l.b16 %v211
    %v503 = vunpack.c.h.b16 %v211
    %v504 = vunpack.c.l.b16 %v212
    %v505 = vunpack.c.h.b16 %v212
    %v506 = vunpack.c.l.b16 %v213
    %v507 = vunpack.c.h.b16 %v213
    %v508 = vpack.c.b16 %v318, %v316
    %v509 = vpack.c.b16 %v319, %v317
    %v510 = vpack.c.b16 %v322, %v320
    %v511 = vpack.c.b16 %v323, %v321
    %v512 = vpack.c.b16 %v326, %v324
    %v513 = vpack.c.b16 %v327, %v325
    %v514 = vpack.c.b16 %v330, %v328
    %v515 = vpack.c.b16 %v331, %v329
    %v516 = vpack.c.b16 %v334, %v332
    %v517 = vpack.c.b16 %v335, %v333
    %v518 = vpack.c.b16 %v338, %v336
    %v519 = vpack.c.b16 %v339, %v337
    %v520 = vpack.c.b16 %v342, %v340
    %v521 = vpack.c.b16 %v343, %v341
    %v522 = vpack.c.b16 %v346, %v344
    %v523 = vpack.c.b16 %v347, %v345
    %v524 = vpack.c.b16 %v350, %v348
    %v525 = vpack.c.b16 %v351, %v349
    %v526 = vpack.c.b16 %v354, %v352
    %v527 = vpack.c.b16 %v355, %v353
    %v528 = vpack.c.b16 %v358, %v356
    %v529 = vpack.c.b16 %v359, %v357
    %v530 = vpack.c.b16 %v362, %v360
    %v531 = vpack.c.b16 %v363, %v361
    %v532 = vpack.c.b16 %v366, %v364
    %v533 = vpack.c.b16 %v367, %v365
    %v534 = vpack.c.b16 %v370, %v368
    %v535 = vpack.c.b16 %v371, %v369
    %v536 = vpack.c.b16 %v374, %v372
    %v537 = vpack.c.b16 %v375, %v373
    %v538 = vpack.c.b16 %v378, %v376
    %v539 = vpack.c.b16 %v379, %v377
    %v540 = vpack.c.b16 %v382, %v380
    %v541 = vpack.c.b16 %v383, %v381
    %v542 = vpack.c.b16 %v386, %v384
    %v543 = vpack.c.b16 %v387, %v385
    %v544 = vpack.c.b16 %v390, %v388
    %v545 = vpack.c.b16 %v391, %v389
    %v546 = vpack.c.b16 %v394, %v392
    %v547 = vpack.c.b16 %v395, %v393
    %v548 = vpack.c.b16 %v398, %v396
    %v549 = vpack.c.b16 %v399, %v397
    %v550 = vpack.c.b16 %v402, %v400
    %v551 = vpack.c.b16 %v403, %v401
    %v552 = vpack.c.b16 %v406, %v404
    %v553 = vpack.c.b16 %v407, %v405
    %v554 = vpack.c.b16 %v410, %v408
    %v555 = vpack.c.b16 %v411, %v409
    %v556 = vpack.c.b16 %v414, %v412
    %v557 = vpack.c.b16 %v415, %v413
    %v558 = vpack.c.b16 %v418, %v416
    %v559 = vpack.c.b16 %v419, %v417
    %v560 = vpack.c.b16 %v422, %v420
    %v561 = vpack.c.b16 %v423, %v421
    %v562 = vpack.c.b16 %v426, %v424
    %v563 = vpack.c.b16 %v427, %v425
    %v564 = vpack.c.b16 %v430, %v428
    %v565 = vpack.c.b16 %v431, %v429
    %v566 = vpack.c.b16 %v434, %v432
    %v567 = vpack.c.b16 %v435, %v433
    %v568 = vpack.c.b16 %v438, %v436
    %v569 = vpack.c.b16 %v439, %v437
    %v570 = vpack.c.b16 %v442, %v440
    %v571 = vpack.c.b16 %v443, %v441
    %v572 = vpack.c.b16 %v446, %v444
    %v573 = vpack.c.b16 %v447, %v445
    %v574 = vpack.c.b16 %v450, %v448
    %v575 = vpack.c.b16 %v451, %v449
    %v576 = vpack.c.b16 %v454, %v452
    %v577 = vpack.c.b16 %v455, %v453
    %v578 = vpack.c.b16 %v458, %v456
    %v579 = vpack.c.b16 %v459, %v457
    %v580 = vpack.c.b16 %v462, %v460
    %v581 = vpack.c.b16 %v463, %v461
    %v582 = vpack.c.b16 %v466, %v464
    %v583 = vpack.c.b16 %v467, %v465
    %v584 = vpack.c.b16 %v470, %v468
    %v585 = vpack.c.b16 %v471, %v469
    %v586 = vpack.c.b16 %v474, %v472
    %v587 = vpack.c.b16 %v475, %v473
    %v588 = vpack.c.b16 %v478, %v476
    %v589 = vpack.c.b16 %v479, %v477
    %v590 = vpack.c.b16 %v482, %v480
    %v591 = vpack.c.b16 %v483, %v481
    %v592 = vpack.c.b16 %v486, %v484
    %v593 = vpack.c.b16 %v487, %v485
    %v594 = vpack.c.b16 %v490, %v488
    %v595 = vpack.c.b16 %v491, %v489
    %v596 = vpack.c.b16 %v494, %v492
    %v597 = vpack.c.b16 %v495, %v493
    %v598 = vpack.c.b16 %v498, %v496
    %v599 = vpack.c.b16 %v499, %v497
    %v600 = vpack.c.b16 %v502, %v500
    %v601 = vpack.c.b16 %v503, %v501
    %v602 = vpack.c.b16 %v506, %v504
    %v603 = vpack.c.b16 %v507, %v505
    %700 = vmatpush.bf16.msra.mxu0 %v522
    %701 = vmatpush.bf16.msra.mxu0 %v520
    %702 = vmatpush.bf16.msra.mxu0 %v518
    %703 = vmatpush.bf16.msra.mxu0 %v516
    %704 = vmatpush.bf16.msra.mxu0 %v514
    %705 = vmatpush.bf16.msra.mxu0 %v512
    %706 = vmatpush.bf16.msra.mxu0 %v510
    %707 = vmatpush.bf16.msra.mxu0 %v508
    %708 = vmatmul.bf16.gmra.mxu0 %v112
    %v709 = vpop.f32.mrf.mxu0
    %v710 = vadd.f32 %v216, %v709
    %v711 = vpop.f32.mrf.mxu0
    %712 = vdwg.mxu0
    %713 = vmatpush.bf16.msra.mxu0 %v538
    %714 = vmatpush.bf16.msra.mxu0 %v536
    %715 = vmatpush.bf16.msra.mxu0 %v534
    %716 = vmatpush.bf16.msra.mxu0 %v532
    %717 = vmatpush.bf16.msra.mxu0 %v530
    %718 = vmatpush.bf16.msra.mxu0 %v528
    %719 = vmatpush.bf16.msra.mxu0 %v526
    %720 = vmatpush.bf16.msra.mxu0 %v524
    %721 = vmatmul.bf16.gmra.mxu0 %v113
    %v722 = vpop.f32.mrf.mxu0
    %v723 = vadd.f32 %v710, %v722
    %v724 = vpop.f32.mrf.mxu0
    %725 = vdwg.mxu0
    %726 = vmatpush.bf16.msra.mxu0 %v554
    %727 = vmatpush.bf16.msra.mxu0 %v552
    %728 = vmatpush.bf16.msra.mxu0 %v550
    %729 = vmatpush.bf16.msra.mxu0 %v548
    %730 = vmatpush.bf16.msra.mxu0 %v546
    %731 = vmatpush.bf16.msra.mxu0 %v544
    %732 = vmatpush.bf16.msra.mxu0 %v542
    %733 = vmatpush.bf16.msra.mxu0 %v540
    %734 = vmatmul.bf16.gmra.mxu0 %v114
    %v735 = vpop.f32.mrf.mxu0
    %v736 = vadd.f32 %v723, %v735
    %v737 = vpop.f32.mrf.mxu0
    %738 = vdwg.mxu0
    %739 = vmatpush.bf16.msra.mxu0 %v570
    %740 = vmatpush.bf16.msra.mxu0 %v568
    %741 = vmatpush.bf16.msra.mxu0 %v566
    %742 = vmatpush.bf16.msra.mxu0 %v564
    %743 = vmatpush.bf16.msra.mxu0 %v562
    %744 = vmatpush.bf16.msra.mxu0 %v560
    %745 = vmatpush.bf16.msra.mxu0 %v558
    %746 = vmatpush.bf16.msra.mxu0 %v556
    %747 = vmatmul.bf16.gmra.mxu0 %v115
    %v748 = vpop.f32.mrf.mxu0
    %v749 = vadd.f32 %v736, %v748
    %v750 = vpop.f32.mrf.mxu0
    %751 = vdwg.mxu0
    %752 = vmatpush.bf16.msra.mxu0 %v586
    %753 = vmatpush.bf16.msra.mxu0 %v584
    %754 = vmatpush.bf16.msra.mxu0 %v582
    %755 = vmatpush.bf16.msra.mxu0 %v580
    %756 = vmatpush.bf16.msra.mxu0 %v578
    %757 = vmatpush.bf16.msra.mxu0 %v576
    %758 = vmatpush.bf16.msra.mxu0 %v574
    %759 = vmatpush.bf16.msra.mxu0 %v572
    %760 = vmatmul.bf16.gmra.mxu0 %v116
    %v761 = vpop.f32.mrf.mxu0
    %v762 = vadd.f32 %v749, %v761
    %v763 = vpop.f32.mrf.mxu0
    %764 = vdwg.mxu0
    %765 = vmatpush.bf16.msra.mxu0 %v602
    %766 = vmatpush.bf16.msra.mxu0 %v600
    %767 = vmatpush.bf16.msra.mxu0 %v598
    %768 = vmatpush.bf16.msra.mxu0 %v596
    %769 = vmatpush.bf16.msra.mxu0 %v594
    %770 = vmatpush.bf16.msra.mxu0 %v592
    %771 = vmatpush.bf16.msra.mxu0 %v590
    %772 = vmatpush.bf16.msra.mxu0 %v588
    %773 = vmatmul.bf16.gmra.mxu0 %v117
    %v774 = vpop.f32.mrf.mxu0
    %v775 = vadd.f32 %v762, %v774
    %v776 = vpop.f32.mrf.mxu0
    %777 = vdwg.mxu0
    %778 = vmatpush.bf16.msra.mxu0 %v523
    %779 = vmatpush.bf16.msra.mxu0 %v521
    %780 = vmatpush.bf16.msra.mxu0 %v519
    %781 = vmatpush.bf16.msra.mxu0 %v517
    %782 = vmatpush.bf16.msra.mxu0 %v515
    %783 = vmatpush.bf16.msra.mxu0 %v513
    %784 = vmatpush.bf16.msra.mxu0 %v511
    %785 = vmatpush.bf16.msra.mxu0 %v509
    %786 = vmatmul.bf16.gmra.mxu0 %v112
    %v787 = vpop.f32.mrf.mxu0
    %v788 = vadd.f32 %v217, %v787
    %v789 = vpop.f32.mrf.mxu0
    %790 = vdwg.mxu0
    %791 = vmatpush.bf16.msra.mxu0 %v539
    %792 = vmatpush.bf16.msra.mxu0 %v537
    %793 = vmatpush.bf16.msra.mxu0 %v535
    %794 = vmatpush.bf16.msra.mxu0 %v533
    %795 = vmatpush.bf16.msra.mxu0 %v531
    %796 = vmatpush.bf16.msra.mxu0 %v529
    %797 = vmatpush.bf16.msra.mxu0 %v527
    %798 = vmatpush.bf16.msra.mxu0 %v525
    %799 = vmatmul.bf16.gmra.mxu0 %v113
    %v800 = vpop.f32.mrf.mxu0
    %v801 = vadd.f32 %v788, %v800
    %v802 = vpop.f32.mrf.mxu0
    %803 = vdwg.mxu0
    %804 = vmatpush.bf16.msra.mxu0 %v555
    %805 = vmatpush.bf16.msra.mxu0 %v553
    %806 = vmatpush.bf16.msra.mxu0 %v551
    %807 = vmatpush.bf16.msra.mxu0 %v549
    %808 = vmatpush.bf16.msra.mxu0 %v547
    %809 = vmatpush.bf16.msra.mxu0 %v545
    %810 = vmatpush.bf16.msra.mxu0 %v543
    %811 = vmatpush.bf16.msra.mxu0 %v541
    %812 = vmatmul.bf16.gmra.mxu0 %v114
    %v813 = vpop.f32.mrf.mxu0
    %v814 = vadd.f32 %v801, %v813
    %v815 = vpop.f32.mrf.mxu0
    %816 = vdwg.mxu0
    %817 = vmatpush.bf16.msra.mxu0 %v571
    %818 = vmatpush.bf16.msra.mxu0 %v569
    %819 = vmatpush.bf16.msra.mxu0 %v567
    %820 = vmatpush.bf16.msra.mxu0 %v565
    %821 = vmatpush.bf16.msra.mxu0 %v563
    %822 = vmatpush.bf16.msra.mxu0 %v561
    %823 = vmatpush.bf16.msra.mxu0 %v559
    %824 = vmatpush.bf16.msra.mxu0 %v557
    %825 = vmatmul.bf16.gmra.mxu0 %v115
    %v826 = vpop.f32.mrf.mxu0
    %v827 = vadd.f32 %v814, %v826
    %v828 = vpop.f32.mrf.mxu0
    %829 = vdwg.mxu0
    %830 = vmatpush.bf16.msra.mxu0 %v587
    %831 = vmatpush.bf16.msra.mxu0 %v585
    %832 = vmatpush.bf16.msra.mxu0 %v583
    %833 = vmatpush.bf16.msra.mxu0 %v581
    %834 = vmatpush.bf16.msra.mxu0 %v579
    %835 = vmatpush.bf16.msra.mxu0 %v577
    %836 = vmatpush.bf16.msra.mxu0 %v575
    %837 = vmatpush.bf16.msra.mxu0 %v573
    %838 = vmatmul.bf16.gmra.mxu0 %v116
    %v839 = vpop.f32.mrf.mxu0
    %v840 = vadd.f32 %v827, %v839
    %v841 = vpop.f32.mrf.mxu0
    %842 = vdwg.mxu0
    %843 = vmatpush.bf16.msra.mxu0 %v603
    %844 = vmatpush.bf16.msra.mxu0 %v601
    %845 = vmatpush.bf16.msra.mxu0 %v599
    %846 = vmatpush.bf16.msra.mxu0 %v597
    %847 = vmatpush.bf16.msra.mxu0 %v595
    %848 = vmatpush.bf16.msra.mxu0 %v593
    %849 = vmatpush.bf16.msra.mxu0 %v591
    %850 = vmatpush.bf16.msra.mxu0 %v589
    %851 = vmatmul.bf16.gmra.mxu0 %v117
    %v852 = vpop.f32.mrf.mxu0
    %v853 = vadd.f32 %v840, %v852
    %v854 = vpop.f32.mrf.mxu0
    %855 = vdwg.mxu0
    %v856 = vmax.f32 %v775, 0.0
    %v857 = vmax.f32 %v853, 0.0
    %v858 = vpack.c.bf16 %v856, %v856
    %v859 = vpack.c.bf16 %v857, %v857
    %v860 = vld [vmem:[#allocation8] sm:$0xff]
    %v861 = vld [vmem:[#allocation8 + $0x8] sm:$0xff]
    %v862 = vld [vmem:[#allocation8 + $0x10] sm:$0xff]
    %v863 = vld [vmem:[#allocation8 + $0x18] sm:$0xff]
    %v864 = vld [vmem:[#allocation8 + $0x20] sm:$0xff]
    %v865 = vld [vmem:[#allocation8 + $0x28] sm:$0xff]
    %v866 = vld [vmem:[#allocation8 + $0x30] sm:$0xff]
    %v867 = vld [vmem:[#allocation8 + $0x38] sm:$0xff]
    %v868 = vld [vmem:[#allocation8 + $0x40] sm:$0xff]
    %v869 = vld [vmem:[#allocation8 + $0x48] sm:$0xff]
    %v870 = vld [vmem:[#allocation8 + $0x50] sm:$0xff]
    %v871 = vld [vmem:[#allocation8 + $0x58] sm:$0xff]
    %v872 = vld [vmem:[#allocation8 + $0x60] sm:$0xff]
    %v873 = vld [vmem:[#allocation8 + $0x68] sm:$0xff]
    %v874 = vld [vmem:[#allocation8 + $0x70] sm:$0xff]
    %v875 = vld [vmem:[#allocation8 + $0x78] sm:$0xff]
    %v876 = vld [vmem:[#allocation8 + $0x80] sm:$0xff]
    %v877 = vld [vmem:[#allocation8 + $0x88] sm:$0xff]
    %v878 = vld [vmem:[#allocation8 + $0x90] sm:$0xff]
    %v879 = vld [vmem:[#allocation8 + $0x98] sm:$0xff]
    %v880 = vld [vmem:[#allocation8 + $0xa0] sm:$0xff]
    %v881 = vld [vmem:[#allocation8 + $0xa8] sm:$0xff]
    %v882 = vld [vmem:[#allocation8 + $0xb0] sm:$0xff]
    %v883 = vld [vmem:[#allocation8 + $0xb8] sm:$0xff]
    %v884 = vld [vmem:[#allocation8 + $0xc0] sm:$0xff]
    %v885 = vld [vmem:[#allocation8 + $0xc8] sm:$0xff]
    %v886 = vld [vmem:[#allocation8 + $0xd0] sm:$0xff]
    %v887 = vld [vmem:[#allocation8 + $0xd8] sm:$0xff]
    %v888 = vld [vmem:[#allocation8 + $0xe0] sm:$0xff]
    %v889 = vld [vmem:[#allocation8 + $0xe8] sm:$0xff]
    %v890 = vld [vmem:[#allocation8 + $0xf0] sm:$0xff]
    %v891 = vld [vmem:[#allocation8 + $0xf8] sm:$0xff]
    %v892 = vld [vmem:[#allocation8 + $0x100] sm:$0xff]
    %v893 = vld [vmem:[#allocation8 + $0x108] sm:$0xff]
    %v894 = vld [vmem:[#allocation8 + $0x110] sm:$0xff]
    %v895 = vld [vmem:[#allocation8 + $0x118] sm:$0xff]
    %v896 = vld [vmem:[#allocation8 + $0x120] sm:$0xff]
    %v897 = vld [vmem:[#allocation8 + $0x128] sm:$0xff]
    %v898 = vld [vmem:[#allocation8 + $0x130] sm:$0xff]
    %v899 = vld [vmem:[#allocation8 + $0x138] sm:$0xff]
    %v900 = vld [vmem:[#allocation8 + $0x140] sm:$0xff]
    %v901 = vld [vmem:[#allocation8 + $0x148] sm:$0xff]
    %v902 = vld [vmem:[#allocation8 + $0x150] sm:$0xff]
    %v903 = vld [vmem:[#allocation8 + $0x158] sm:$0xff]
    %v904 = vld [vmem:[#allocation8 + $0x160] sm:$0xff]
    %v905 = vld [vmem:[#allocation8 + $0x168] sm:$0xff]
    %v906 = vld [vmem:[#allocation8 + $0x170] sm:$0xff]
    %v907 = vld [vmem:[#allocation8 + $0x178] sm:$0xff]
    %v908 = vld [vmem:[#allocation8 + $0x180] sm:$0xff]
    %v909 = vld [vmem:[#allocation8 + $0x188] sm:$0xff]
    %v910 = vld [vmem:[#allocation8 + $0x190] sm:$0xff]
    %v911 = vld [vmem:[#allocation8 + $0x198] sm:$0xff]
    %v912 = vld [vmem:[#allocation8 + $0x1a0] sm:$0xff]
    %v913 = vld [vmem:[#allocation8 + $0x1a8] sm:$0xff]
    %v914 = vld [vmem:[#allocation8 + $0x1b0] sm:$0xff]
    %v915 = vld [vmem:[#allocation8 + $0x1b8] sm:$0xff]
    %v916 = vld [vmem:[#allocation8 + $0x1c0] sm:$0xff]
    %v917 = vld [vmem:[#allocation8 + $0x1c8] sm:$0xff]
    %v918 = vld [vmem:[#allocation8 + $0x1d0] sm:$0xff]
    %v919 = vld [vmem:[#allocation8 + $0x1d8] sm:$0xff]
    %v920 = vld [vmem:[#allocation8 + $0x1e0] sm:$0xff]
    %v921 = vld [vmem:[#allocation8 + $0x1e8] sm:$0xff]
    %v922 = vld [vmem:[#allocation8 + $0x1f0] sm:$0xff]
    %v923 = vld [vmem:[#allocation8 + $0x1f8] sm:$0xff]
    %v924 = vld [vmem:[#allocation8 + $0x200] sm:$0xff]
    %v925 = vld [vmem:[#allocation8 + $0x208] sm:$0xff]
    %v926 = vld [vmem:[#allocation8 + $0x210] sm:$0xff]
    %v927 = vld [vmem:[#allocation8 + $0x218] sm:$0xff]
    %v928 = vld [vmem:[#allocation8 + $0x220] sm:$0xff]
    %v929 = vld [vmem:[#allocation8 + $0x228] sm:$0xff]
    %v930 = vld [vmem:[#allocation8 + $0x230] sm:$0xff]
    %v931 = vld [vmem:[#allocation8 + $0x238] sm:$0xff]
    %v932 = vld [vmem:[#allocation8 + $0x240] sm:$0xff]
    %v933 = vld [vmem:[#allocation8 + $0x248] sm:$0xff]
    %v934 = vld [vmem:[#allocation8 + $0x250] sm:$0xff]
    %v935 = vld [vmem:[#allocation8 + $0x258] sm:$0xff]
    %v936 = vld [vmem:[#allocation8 + $0x260] sm:$0xff]
    %v937 = vld [vmem:[#allocation8 + $0x268] sm:$0xff]
    %v938 = vld [vmem:[#allocation8 + $0x270] sm:$0xff]
    %v939 = vld [vmem:[#allocation8 + $0x278] sm:$0xff]
    %v940 = vld [vmem:[#allocation8 + $0x280] sm:$0xff]
    %v941 = vld [vmem:[#allocation8 + $0x288] sm:$0xff]
    %v942 = vld [vmem:[#allocation8 + $0x290] sm:$0xff]
    %v943 = vld [vmem:[#allocation8 + $0x298] sm:$0xff]
    %v944 = vld [vmem:[#allocation8 + $0x2a0] sm:$0xff]
    %v945 = vld [vmem:[#allocation8 + $0x2a8] sm:$0xff]
    %v946 = vld [vmem:[#allocation8 + $0x2b0] sm:$0xff]
    %v947 = vld [vmem:[#allocation8 + $0x2b8] sm:$0xff]
    %v948 = vld [vmem:[#allocation8 + $0x2c0] sm:$0xff]
    %v949 = vld [vmem:[#allocation8 + $0x2c8] sm:$0xff]
    %v950 = vld [vmem:[#allocation8 + $0x2d0] sm:$0xff]
    %v951 = vld [vmem:[#allocation8 + $0x2d8] sm:$0xff]
    %v952 = vld [vmem:[#allocation8 + $0x2e0] sm:$0xff]
    %v953 = vld [vmem:[#allocation8 + $0x2e8] sm:$0xff]
    %v954 = vld [vmem:[#allocation8 + $0x2f0] sm:$0xff]
    %v955 = vld [vmem:[#allocation8 + $0x2f8] sm:$0xff]
    %v956 = vld [vmem:[#allocation10] sm:$0x3f]
    %v958 = vperm.slane %v956, 0
    %v959 = vperm.slane %v956, 1
    %v960 = vperm.slane %v956, 2
    %v961 = vperm.slane %v956, 3
    %v962 = vperm.slane %v956, 4
    %v963 = vperm.slane %v956, 5
    %v1066 = vunpack.c.l.b16 %v860
    %v1067 = vunpack.c.h.b16 %v860
    %v1068 = vunpack.c.l.b16 %v861
    %v1069 = vunpack.c.h.b16 %v861
    %v1070 = vunpack.c.l.b16 %v862
    %v1071 = vunpack.c.h.b16 %v862
    %v1072 = vunpack.c.l.b16 %v863
    %v1073 = vunpack.c.h.b16 %v863
    %v1074 = vunpack.c.l.b16 %v864
    %v1075 = vunpack.c.h.b16 %v864
    %v1076 = vunpack.c.l.b16 %v865
    %v1077 = vunpack.c.h.b16 %v865
    %v1078 = vunpack.c.l.b16 %v866
    %v1079 = vunpack.c.h.b16 %v866
    %v1080 = vunpack.c.l.b16 %v867
    %v1081 = vunpack.c.h.b16 %v867
    %v1082 = vunpack.c.l.b16 %v868
    %v1083 = vunpack.c.h.b16 %v868
    %v1084 = vunpack.c.l.b16 %v869
    %v1085 = vunpack.c.h.b16 %v869
    %v1086 = vunpack.c.l.b16 %v870
    %v1087 = vunpack.c.h.b16 %v870
    %v1088 = vunpack.c.l.b16 %v871
    %v1089 = vunpack.c.h.b16 %v871
    %v1090 = vunpack.c.l.b16 %v872
    %v1091 = vunpack.c.h.b16 %v872
    %v1092 = vunpack.c.l.b16 %v873
    %v1093 = vunpack.c.h.b16 %v873
    %v1094 = vunpack.c.l.b16 %v874
    %v1095 = vunpack.c.h.b16 %v874
    %v1096 = vunpack.c.l.b16 %v875
    %v1097 = vunpack.c.h.b16 %v875
    %v1098 = vunpack.c.l.b16 %v876
    %v1099 = vunpack.c.h.b16 %v876
    %v1100 = vunpack.c.l.b16 %v877
    %v1101 = vunpack.c.h.b16 %v877
    %v1102 = vunpack.c.l.b16 %v878
    %v1103 = vunpack.c.h.b16 %v878
    %v1104 = vunpack.c.l.b16 %v879
    %v1105 = vunpack.c.h.b16 %v879
    %v1106 = vunpack.c.l.b16 %v880
    %v1107 = vunpack.c.h.b16 %v880
    %v1108 = vunpack.c.l.b16 %v881
    %v1109 = vunpack.c.h.b16 %v881
    %v1110 = vunpack.c.l.b16 %v882
    %v1111 = vunpack.c.h.b16 %v882
    %v1112 = vunpack.c.l.b16 %v883
    %v1113 = vunpack.c.h.b16 %v883
    %v1114 = vunpack.c.l.b16 %v884
    %v1115 = vunpack.c.h.b16 %v884
    %v1116 = vunpack.c.l.b16 %v885
    %v1117 = vunpack.c.h.b16 %v885
    %v1118 = vunpack.c.l.b16 %v886
    %v1119 = vunpack.c.h.b16 %v886
    %v1120 = vunpack.c.l.b16 %v887
    %v1121 = vunpack.c.h.b16 %v887
    %v1122 = vunpack.c.l.b16 %v888
    %v1123 = vunpack.c.h.b16 %v888
    %v1124 = vunpack.c.l.b16 %v889
    %v1125 = vunpack.c.h.b16 %v889
    %v1126 = vunpack.c.l.b16 %v890
    %v1127 = vunpack.c.h.b16 %v890
    %v1128 = vunpack.c.l.b16 %v891
    %v1129 = vunpack.c.h.b16 %v891
    %v1130 = vunpack.c.l.b16 %v892
    %v1131 = vunpack.c.h.b16 %v892
    %v1132 = vunpack.c.l.b16 %v893
    %v1133 = vunpack.c.h.b16 %v893
    %v1134 = vunpack.c.l.b16 %v894
    %v1135 = vunpack.c.h.b16 %v894
    %v1136 = vunpack.c.l.b16 %v895
    %v1137 = vunpack.c.h.b16 %v895
    %v1138 = vunpack.c.l.b16 %v896
    %v1139 = vunpack.c.h.b16 %v896
    %v1140 = vunpack.c.l.b16 %v897
    %v1141 = vunpack.c.h.b16 %v897
    %v1142 = vunpack.c.l.b16 %v898
    %v1143 = vunpack.c.h.b16 %v898
    %v1144 = vunpack.c.l.b16 %v899
    %v1145 = vunpack.c.h.b16 %v899
    %v1146 = vunpack.c.l.b16 %v900
    %v1147 = vunpack.c.h.b16 %v900
    %v1148 = vunpack.c.l.b16 %v901
    %v1149 = vunpack.c.h.b16 %v901
    %v1150 = vunpack.c.l.b16 %v902
    %v1151 = vunpack.c.h.b16 %v902
    %v1152 = vunpack.c.l.b16 %v903
    %v1153 = vunpack.c.h.b16 %v903
    %v1154 = vunpack.c.l.b16 %v904
    %v1155 = vunpack.c.h.b16 %v904
    %v1156 = vunpack.c.l.b16 %v905
    %v1157 = vunpack.c.h.b16 %v905
    %v1158 = vunpack.c.l.b16 %v906
    %v1159 = vunpack.c.h.b16 %v906
    %v1160 = vunpack.c.l.b16 %v907
    %v1161 = vunpack.c.h.b16 %v907
    %v1162 = vunpack.c.l.b16 %v908
    %v1163 = vunpack.c.h.b16 %v908
    %v1164 = vunpack.c.l.b16 %v909
    %v1165 = vunpack.c.h.b16 %v909
    %v1166 = vunpack.c.l.b16 %v910
    %v1167 = vunpack.c.h.b16 %v910
    %v1168 = vunpack.c.l.b16 %v911
    %v1169 = vunpack.c.h.b16 %v911
    %v1170 = vunpack.c.l.b16 %v912
    %v1171 = vunpack.c.h.b16 %v912
    %v1172 = vunpack.c.l.b16 %v913
    %v1173 = vunpack.c.h.b16 %v913
    %v1174 = vunpack.c.l.b16 %v914
    %v1175 = vunpack.c.h.b16 %v914
    %v1176 = vunpack.c.l.b16 %v915
    %v1177 = vunpack.c.h.b16 %v915
    %v1178 = vunpack.c.l.b16 %v916
    %v1179 = vunpack.c.h.b16 %v916
    %v1180 = vunpack.c.l.b16 %v917
    %v1181 = vunpack.c.h.b16 %v917
    %v1182 = vunpack.c.l.b16 %v918
    %v1183 = vunpack.c.h.b16 %v918
    %v1184 = vunpack.c.l.b16 %v919
    %v1185 = vunpack.c.h.b16 %v919
    %v1186 = vunpack.c.l.b16 %v920
    %v1187 = vunpack.c.h.b16 %v920
    %v1188 = vunpack.c.l.b16 %v921
    %v1189 = vunpack.c.h.b16 %v921
    %v1190 = vunpack.c.l.b16 %v922
    %v1191 = vunpack.c.h.b16 %v922
    %v1192 = vunpack.c.l.b16 %v923
    %v1193 = vunpack.c.h.b16 %v923
    %v1194 = vunpack.c.l.b16 %v924
    %v1195 = vunpack.c.h.b16 %v924
    %v1196 = vunpack.c.l.b16 %v925
    %v1197 = vunpack.c.h.b16 %v925
    %v1198 = vunpack.c.l.b16 %v926
    %v1199 = vunpack.c.h.b16 %v926
    %v1200 = vunpack.c.l.b16 %v927
    %v1201 = vunpack.c.h.b16 %v927
    %v1202 = vunpack.c.l.b16 %v928
    %v1203 = vunpack.c.h.b16 %v928
    %v1204 = vunpack.c.l.b16 %v929
    %v1205 = vunpack.c.h.b16 %v929
    %v1206 = vunpack.c.l.b16 %v930
    %v1207 = vunpack.c.h.b16 %v930
    %v1208 = vunpack.c.l.b16 %v931
    %v1209 = vunpack.c.h.b16 %v931
    %v1210 = vunpack.c.l.b16 %v932
    %v1211 = vunpack.c.h.b16 %v932
    %v1212 = vunpack.c.l.b16 %v933
    %v1213 = vunpack.c.h.b16 %v933
    %v1214 = vunpack.c.l.b16 %v934
    %v1215 = vunpack.c.h.b16 %v934
    %v1216 = vunpack.c.l.b16 %v935
    %v1217 = vunpack.c.h.b16 %v935
    %v1218 = vunpack.c.l.b16 %v936
    %v1219 = vunpack.c.h.b16 %v936
    %v1220 = vunpack.c.l.b16 %v937
    %v1221 = vunpack.c.h.b16 %v937
    %v1222 = vunpack.c.l.b16 %v938
    %v1223 = vunpack.c.h.b16 %v938
    %v1224 = vunpack.c.l.b16 %v939
    %v1225 = vunpack.c.h.b16 %v939
    %v1226 = vunpack.c.l.b16 %v940
    %v1227 = vunpack.c.h.b16 %v940
    %v1228 = vunpack.c.l.b16 %v941
    %v1229 = vunpack.c.h.b16 %v941
    %v1230 = vunpack.c.l.b16 %v942
    %v1231 = vunpack.c.h.b16 %v942
    %v1232 = vunpack.c.l.b16 %v943
    %v1233 = vunpack.c.h.b16 %v943
    %v1234 = vunpack.c.l.b16 %v944
    %v1235 = vunpack.c.h.b16 %v944
    %v1236 = vunpack.c.l.b16 %v945
    %v1237 = vunpack.c.h.b16 %v945
    %v1238 = vunpack.c.l.b16 %v946
    %v1239 = vunpack.c.h.b16 %v946
    %v1240 = vunpack.c.l.b16 %v947
    %v1241 = vunpack.c.h.b16 %v947
    %v1242 = vunpack.c.l.b16 %v948
    %v1243 = vunpack.c.h.b16 %v948
    %v1244 = vunpack.c.l.b16 %v949
    %v1245 = vunpack.c.h.b16 %v949
    %v1246 = vunpack.c.l.b16 %v950
    %v1247 = vunpack.c.h.b16 %v950
    %v1248 = vunpack.c.l.b16 %v951
    %v1249 = vunpack.c.h.b16 %v951
    %v1250 = vunpack.c.l.b16 %v952
    %v1251 = vunpack.c.h.b16 %v952
    %v1252 = vunpack.c.l.b16 %v953
    %v1253 = vunpack.c.h.b16 %v953
    %v1254 = vunpack.c.l.b16 %v954
    %v1255 = vunpack.c.h.b16 %v954
    %v1256 = vunpack.c.l.b16 %v955
    %v1257 = vunpack.c.h.b16 %v955
    %v1258 = vpack.c.b16 %v1072, %v1066
    %v1259 = vpack.c.b16 %v1073, %v1067
    %v1260 = vpack.c.b16 %v1074, %v1068
    %v1261 = vpack.c.b16 %v1075, %v1069
    %v1262 = vpack.c.b16 %v1076, %v1070
    %v1263 = vpack.c.b16 %v1077, %v1071
    %v1264 = vpack.c.b16 %v1084, %v1078
    %v1265 = vpack.c.b16 %v1085, %v1079
    %v1266 = vpack.c.b16 %v1086, %v1080
    %v1267 = vpack.c.b16 %v1087, %v1081
    %v1268 = vpack.c.b16 %v1088, %v1082
    %v1269 = vpack.c.b16 %v1089, %v1083
    %v1270 = vpack.c.b16 %v1096, %v1090
    %v1271 = vpack.c.b16 %v1097, %v1091
    %v1272 = vpack.c.b16 %v1098, %v1092
    %v1273 = vpack.c.b16 %v1099, %v1093
    %v1274 = vpack.c.b16 %v1100, %v1094
    %v1275 = vpack.c.b16 %v1101, %v1095
    %v1276 = vpack.c.b16 %v1108, %v1102
    %v1277 = vpack.c.b16 %v1109, %v1103
    %v1278 = vpack.c.b16 %v1110, %v1104
    %v1279 = vpack.c.b16 %v1111, %v1105
    %v1280 = vpack.c.b16 %v1112, %v1106
    %v1281 = vpack.c.b16 %v1113, %v1107
    %v1282 = vpack.c.b16 %v1120, %v1114
    %v1283 = vpack.c.b16 %v1121, %v1115
    %v1284 = vpack.c.b16 %v1122, %v1116
    %v1285 = vpack.c.b16 %v1123, %v1117
    %v1286 = vpack.c.b16 %v1124, %v1118
    %v1287 = vpack.c.b16 %v1125, %v1119
    %v1288 = vpack.c.b16 %v1132, %v1126
    %v1289 = vpack.c.b16 %v1133, %v1127
    %v1290 = vpack.c.b16 %v1134, %v1128
    %v1291 = vpack.c.b16 %v1135, %v1129
    %v1292 = vpack.c.b16 %v1136, %v1130
    %v1293 = vpack.c.b16 %v1137, %v1131
    %v1294 = vpack.c.b16 %v1144, %v1138
    %v1295 = vpack.c.b16 %v1145, %v1139
    %v1296 = vpack.c.b16 %v1146, %v1140
    %v1297 = vpack.c.b16 %v1147, %v1141
    %v1298 = vpack.c.b16 %v1148, %v1142
    %v1299 = vpack.c.b16 %v1149, %v1143
    %v1300 = vpack.c.b16 %v1156, %v1150
    %v1301 = vpack.c.b16 %v1157, %v1151
    %v1302 = vpack.c.b16 %v1158, %v1152
    %v1303 = vpack.c.b16 %v1159, %v1153
    %v1304 = vpack.c.b16 %v1160, %v1154
    %v1305 = vpack.c.b16 %v1161, %v1155
    %v1306 = vpack.c.b16 %v1168, %v1162
    %v1307 = vpack.c.b16 %v1169, %v1163
    %v1308 = vpack.c.b16 %v1170, %v1164
    %v1309 = vpack.c.b16 %v1171, %v1165
    %v1310 = vpack.c.b16 %v1172, %v1166
    %v1311 = vpack.c.b16 %v1173, %v1167
    %v1312 = vpack.c.b16 %v1180, %v1174
    %v1313 = vpack.c.b16 %v1181, %v1175
    %v1314 = vpack.c.b16 %v1182, %v1176
    %v1315 = vpack.c.b16 %v1183, %v1177
    %v1316 = vpack.c.b16 %v1184, %v1178
    %v1317 = vpack.c.b16 %v1185, %v1179
    %v1318 = vpack.c.b16 %v1192, %v1186
    %v1319 = vpack.c.b16 %v1193, %v1187
    %v1320 = vpack.c.b16 %v1194, %v1188
    %v1321 = vpack.c.b16 %v1195, %v1189
    %v1322 = vpack.c.b16 %v1196, %v1190
    %v1323 = vpack.c.b16 %v1197, %v1191
    %v1324 = vpack.c.b16 %v1204, %v1198
    %v1325 = vpack.c.b16 %v1205, %v1199
    %v1326 = vpack.c.b16 %v1206, %v1200
    %v1327 = vpack.c.b16 %v1207, %v1201
    %v1328 = vpack.c.b16 %v1208, %v1202
    %v1329 = vpack.c.b16 %v1209, %v1203
    %v1330 = vpack.c.b16 %v1216, %v1210
    %v1331 = vpack.c.b16 %v1217, %v1211
    %v1332 = vpack.c.b16 %v1218, %v1212
    %v1333 = vpack.c.b16 %v1219, %v1213
    %v1334 = vpack.c.b16 %v1220, %v1214
    %v1335 = vpack.c.b16 %v1221, %v1215
    %v1336 = vpack.c.b16 %v1228, %v1222
    %v1337 = vpack.c.b16 %v1229, %v1223
    %v1338 = vpack.c.b16 %v1230, %v1224
    %v1339 = vpack.c.b16 %v1231, %v1225
    %v1340 = vpack.c.b16 %v1232, %v1226
    %v1341 = vpack.c.b16 %v1233, %v1227
    %v1342 = vpack.c.b16 %v1240, %v1234
    %v1343 = vpack.c.b16 %v1241, %v1235
    %v1344 = vpack.c.b16 %v1242, %v1236
    %v1345 = vpack.c.b16 %v1243, %v1237
    %v1346 = vpack.c.b16 %v1244, %v1238
    %v1347 = vpack.c.b16 %v1245, %v1239
    %v1348 = vpack.c.b16 %v1252, %v1246
    %v1349 = vpack.c.b16 %v1253, %v1247
    %v1350 = vpack.c.b16 %v1254, %v1248
    %v1351 = vpack.c.b16 %v1255, %v1249
    %v1352 = vpack.c.b16 %v1256, %v1250
    %v1353 = vpack.c.b16 %v1257, %v1251
    %1450 = vmatpush.bf16.msra.mxu0 %v1300
    %1451 = vmatpush.bf16.msra.mxu0 %v1294
    %1452 = vmatpush.bf16.msra.mxu0 %v1288
    %1453 = vmatpush.bf16.msra.mxu0 %v1282
    %1454 = vmatpush.bf16.msra.mxu0 %v1276
    %1455 = vmatpush.bf16.msra.mxu0 %v1270
    %1456 = vmatpush.bf16.msra.mxu0 %v1264
    %1457 = vmatpush.bf16.msra.mxu0 %v1258
    %1458 = vmatmul.bf16.gmra.mxu0 %v858
    %v1459 = vpop.f32.mrf.mxu0
    %v1460 = vadd.f32 %v958, %v1459
    %v1461 = vpop.f32.mrf.mxu0
    %1462 = vdwg.mxu0
    %1463 = vmatpush.bf16.msra.mxu0 %v1348
    %1464 = vmatpush.bf16.msra.mxu0 %v1342
    %1465 = vmatpush.bf16.msra.mxu0 %v1336
    %1466 = vmatpush.bf16.msra.mxu0 %v1330
    %1467 = vmatpush.bf16.msra.mxu0 %v1324
    %1468 = vmatpush.bf16.msra.mxu0 %v1318
    %1469 = vmatpush.bf16.msra.mxu0 %v1312
    %1470 = vmatpush.bf16.msra.mxu0 %v1306
    %1471 = vmatmul.bf16.gmra.mxu0 %v859
    %v1472 = vpop.f32.mrf.mxu0
    %v1473 = vadd.f32 %v1460, %v1472
    %v1474 = vpop.f32.mrf.mxu0
    %1475 = vdwg.mxu0
    %1476 = vmatpush.bf16.msra.mxu0 %v1301
    %1477 = vmatpush.bf16.msra.mxu0 %v1295
    %1478 = vmatpush.bf16.msra.mxu0 %v1289
    %1479 = vmatpush.bf16.msra.mxu0 %v1283
    %1480 = vmatpush.bf16.msra.mxu0 %v1277
    %1481 = vmatpush.bf16.msra.mxu0 %v1271
    %1482 = vmatpush.bf16.msra.mxu0 %v1265
    %1483 = vmatpush.bf16.msra.mxu0 %v1259
    %1484 = vmatmul.bf16.gmra.mxu0 %v858
    %v1485 = vpop.f32.mrf.mxu0
    %v1486 = vadd.f32 %v959, %v1485
    %v1487 = vpop.f32.mrf.mxu0
    %1488 = vdwg.mxu0
    %1489 = vmatpush.bf16.msra.mxu0 %v1349
    %1490 = vmatpush.bf16.msra.mxu0 %v1343
    %1491 = vmatpush.bf16.msra.mxu0 %v1337
    %1492 = vmatpush.bf16.msra.mxu0 %v1331
    %1493 = vmatpush.bf16.msra.mxu0 %v1325
    %1494 = vmatpush.bf16.msra.mxu0 %v1319
    %1495 = vmatpush.bf16.msra.mxu0 %v1313
    %1496 = vmatpush.bf16.msra.mxu0 %v1307
    %1497 = vmatmul.bf16.gmra.mxu0 %v859
    %v1498 = vpop.f32.mrf.mxu0
    %v1499 = vadd.f32 %v1486, %v1498
    %v1500 = vpop.f32.mrf.mxu0
    %1501 = vdwg.mxu0
    %1502 = vmatpush.bf16.msra.mxu0 %v1302
    %1503 = vmatpush.bf16.msra.mxu0 %v1296
    %1504 = vmatpush.bf16.msra.mxu0 %v1290
    %1505 = vmatpush.bf16.msra.mxu0 %v1284
    %1506 = vmatpush.bf16.msra.mxu0 %v1278
    %1507 = vmatpush.bf16.msra.mxu0 %v1272
    %1508 = vmatpush.bf16.msra.mxu0 %v1266
    %1509 = vmatpush.bf16.msra.mxu0 %v1260
    %1510 = vmatmul.bf16.gmra.mxu0 %v858
    %v1511 = vpop.f32.mrf.mxu0
    %v1512 = vadd.f32 %v960, %v1511
    %v1513 = vpop.f32.mrf.mxu0
    %1514 = vdwg.mxu0
    %1515 = vmatpush.bf16.msra.mxu0 %v1350
    %1516 = vmatpush.bf16.msra.mxu0 %v1344
    %1517 = vmatpush.bf16.msra.mxu0 %v1338
    %1518 = vmatpush.bf16.msra.mxu0 %v1332
    %1519 = vmatpush.bf16.msra.mxu0 %v1326
    %1520 = vmatpush.bf16.msra.mxu0 %v1320
    %1521 = vmatpush.bf16.msra.mxu0 %v1314
    %1522 = vmatpush.bf16.msra.mxu0 %v1308
    %1523 = vmatmul.bf16.gmra.mxu0 %v859
    %v1524 = vpop.f32.mrf.mxu0
    %v1525 = vadd.f32 %v1512, %v1524
    %v1526 = vpop.f32.mrf.mxu0
    %1527 = vdwg.mxu0
    %1528 = vmatpush.bf16.msra.mxu0 %v1303
    %1529 = vmatpush.bf16.msra.mxu0 %v1297
    %1530 = vmatpush.bf16.msra.mxu0 %v1291
    %1531 = vmatpush.bf16.msra.mxu0 %v1285
    %1532 = vmatpush.bf16.msra.mxu0 %v1279
    %1533 = vmatpush.bf16.msra.mxu0 %v1273
    %1534 = vmatpush.bf16.msra.mxu0 %v1267
    %1535 = vmatpush.bf16.msra.mxu0 %v1261
    %1536 = vmatmul.bf16.gmra.mxu0 %v858
    %v1537 = vpop.f32.mrf.mxu0
    %v1538 = vadd.f32 %v961, %v1537
    %v1539 = vpop.f32.mrf.mxu0
    %1540 = vdwg.mxu0
    %1541 = vmatpush.bf16.msra.mxu0 %v1351
    %1542 = vmatpush.bf16.msra.mxu0 %v1345
    %1543 = vmatpush.bf16.msra.mxu0 %v1339
    %1544 = vmatpush.bf16.msra.mxu0 %v1333
    %1545 = vmatpush.bf16.msra.mxu0 %v1327
    %1546 = vmatpush.bf16.msra.mxu0 %v1321
    %1547 = vmatpush.bf16.msra.mxu0 %v1315
    %1548 = vmatpush.bf16.msra.mxu0 %v1309
    %1549 = vmatmul.bf16.gmra.mxu0 %v859
    %v1550 = vpop.f32.mrf.mxu0
    %v1551 = vadd.f32 %v1538, %v1550
    %v1552 = vpop.f32.mrf.mxu0
    %1553 = vdwg.mxu0
    %1554 = vmatpush.bf16.msra.mxu0 %v1304
    %1555 = vmatpush.bf16.msra.mxu0 %v1298
    %1556 = vmatpush.bf16.msra.mxu0 %v1292
    %1557 = vmatpush.bf16.msra.mxu0 %v1286
    %1558 = vmatpush.bf16.msra.mxu0 %v1280
    %1559 = vmatpush.bf16.msra.mxu0 %v1274
    %1560 = vmatpush.bf16.msra.mxu0 %v1268
    %1561 = vmatpush.bf16.msra.mxu0 %v1262
    %1562 = vmatmul.bf16.gmra.mxu0 %v858
    %v1563 = vpop.f32.mrf.mxu0
    %v1564 = vadd.f32 %v962, %v1563
    %v1565 = vpop.f32.mrf.mxu0
    %1566 = vdwg.mxu0
    %1567 = vmatpush.bf16.msra.mxu0 %v1352
    %1568 = vmatpush.bf16.msra.mxu0 %v1346
    %1569 = vmatpush.bf16.msra.mxu0 %v1340
    %1570 = vmatpush.bf16.msra.mxu0 %v1334
    %1571 = vmatpush.bf16.msra.mxu0 %v1328
    %1572 = vmatpush.bf16.msra.mxu0 %v1322
    %1573 = vmatpush.bf16.msra.mxu0 %v1316
    %1574 = vmatpush.bf16.msra.mxu0 %v1310
    %1575 = vmatmul.bf16.gmra.mxu0 %v859
    %v1576 = vpop.f32.mrf.mxu0
    %v1577 = vadd.f32 %v1564, %v1576
    %v1578 = vpop.f32.mrf.mxu0
    %1579 = vdwg.mxu0
    %1580 = vmatpush.bf16.msra.mxu0 %v1305
    %1581 = vmatpush.bf16.msra.mxu0 %v1299
    %1582 = vmatpush.bf16.msra.mxu0 %v1293
    %1583 = vmatpush.bf16.msra.mxu0 %v1287
    %1584 = vmatpush.bf16.msra.mxu0 %v1281
    %1585 = vmatpush.bf16.msra.mxu0 %v1275
    %1586 = vmatpush.bf16.msra.mxu0 %v1269
    %1587 = vmatpush.bf16.msra.mxu0 %v1263
    %1588 = vmatmul.bf16.gmra.mxu0 %v858
    %v1589 = vpop.f32.mrf.mxu0
    %v1590 = vadd.f32 %v963, %v1589
    %v1591 = vpop.f32.mrf.mxu0
    %1592 = vdwg.mxu0
    %1593 = vmatpush.bf16.msra.mxu0 %v1353
    %1594 = vmatpush.bf16.msra.mxu0 %v1347
    %1595 = vmatpush.bf16.msra.mxu0 %v1341
    %1596 = vmatpush.bf16.msra.mxu0 %v1335
    %1597 = vmatpush.bf16.msra.mxu0 %v1329
    %1598 = vmatpush.bf16.msra.mxu0 %v1323
    %1599 = vmatpush.bf16.msra.mxu0 %v1317
    %1600 = vmatpush.bf16.msra.mxu0 %v1311
    %1601 = vmatmul.bf16.gmra.mxu0 %v859
    %v1602 = vpop.f32.mrf.mxu0
    %v1603 = vadd.f32 %v1590, %v1602
    %v1604 = vpop.f32.mrf.mxu0
    %1605 = vdwg.mxu0
    %v1612 = vrot.slane %v1499, 6
    %v1613 = vrot.slane %v1525, 4
    %v1614 = vrot.slane %v1551, 2
    %v1615 = vrot.slane %v1603, 6
    %vm1616 = vcmask 1041408
    %v1617 = vsel %vm1616, %v1473, %v1612
    %vm1618 = vcmask 1045508
    %v1619 = vsel %vm1618, %v1613, %v1614
    %vm1620 = vcmask 1043456
    %v1621 = vsel %vm1620, %v1617, %v1619
    %v1622 = vsel %vm1616, %v1577, %v1615
    %1625 = vst [vmem:[#allocation11] sm:$0xff] %v1621
    %1626 = vst [vmem:[#allocation11 + $0x8] sm:$0xf] %v1622
    // Predicated region
    $region42: #{tpu_custom_call.1} parent=1 // pred_check
      _
    $region43: #{tpu_custom_call.1} parent=1 // pred_check_branch
      %1628 = sbr.rel (0) target = $region45
    $region44: #{tpu_custom_call.1} parent=1 // pred_region
      %1630 = vsyncadd [#allocation4], 0
      %s1632 = sshll.u32 [#allocation11], 4
      %s1633 = int_to_ptr.vmem [resolvable:$true] %s1632
      %s1634 = sshll.u32 %s5, 4
      %s1635 = int_to_ptr.hbm [resolvable:$true] %s1634
      %1637 = dma.vmem_to_hbm [thread:$0]  %s1633, 192, %s1635, [#allocation4]
    $region45: #{tpu_custom_call.1} parent=1 // pred_fallthru
      _
    // Predicated region
    $region46: #{tpu_custom_call.1} parent=1 // pred_check
      _
    $region47: #{tpu_custom_call.1} parent=1 // pred_check_branch
      %1639 = sbr.rel (0) target = $region49
    $region48: #{tpu_custom_call.1} parent=1 // pred_region
      %1641 = dma.done [#allocation4], 192
    $region49: #{tpu_custom_call.1} parent=1 // pred_fallthru
      _
    %1642 = vsyncpa [#allocation3], 1
    %1643 = vsyncpa [#allocation6], 1
    %1644 = vsyncpa [#allocation9], 1
    %1645 = vsyncpa [#allocation4], 1

</llo_original>
